<compile_context>
chip_gen: v7x
topology: tpu7x:2x2x1
jax: 0.10.0
libtpu: 0.0.40
codegen_flags: <defaults>
</compile_context>

<pallas_src>
import functools
import math

import jax
import jax.numpy as jnp
from jax import lax
from jax.experimental import pallas as pl
from jax.experimental.pallas import tpu as pltpu

LOG_SIG_MAX = 2.0
LOG_SIG_MIN = -20.0


def _policy_fwd_kernel(state_ref, w1_ref, w2_ref, b12_ref, wh_ref, bh_ref,
                       out_ref, *, a_dim):
    """Whole 4-layer MLP forward for one batch tile, heads fused."""
    x = state_ref[...]

    # linear1 + ReLU   (bias row 0 of the packed [2, hidden] bias array)
    h1 = jnp.dot(x, w1_ref[...], preferred_element_type=jnp.float32) + b12_ref[0:1, :]
    h1 = jnp.maximum(h1, 0.0)

    # linear2 + ReLU   (bias row 1)
    h2 = jnp.dot(h1, w2_ref[...], preferred_element_type=jnp.float32) + b12_ref[1:2, :]
    h2 = jnp.maximum(h2, 0.0)

    # fused heads: columns [0, a_dim) = mu, [a_dim, 2*a_dim) = log_sigma,
    # remaining lanes are zero padding (discarded by the wrapper).
    y = jnp.dot(h2, wh_ref[...], preferred_element_type=jnp.float32) + bh_ref[...]

    # clamp only the non-mu lanes (log_sigma half; padding lanes are discarded)
    col = lax.broadcasted_iota(jnp.int32, y.shape, 1)
    out_ref[...] = jnp.where(col < a_dim, y, jnp.clip(y, LOG_SIG_MIN, LOG_SIG_MAX))


def pack_params(params):
    """One-time repack: fuse the two heads, pad to 128 lanes, pack hidden biases."""
    a_dim = params["wmu"].shape[1]
    n_head = 2 * a_dim
    head_pad = max(128, ((n_head + 127) // 128) * 128)

    wh = jnp.concatenate([params["wmu"], params["wls"]], axis=1)      # [hidden, 2*a_dim]
    bh = jnp.concatenate([params["bmu"], params["bls"]], axis=1)      # [1, 2*a_dim]
    wh = jnp.pad(wh, ((0, 0), (0, head_pad - n_head)))                # [hidden, head_pad]
    bh = jnp.pad(bh, ((0, 0), (0, head_pad - n_head)))                # [1, head_pad]
    b12 = jnp.concatenate([params["b1"], params["b2"]], axis=0)       # [2, hidden]

    return {
        "w1": params["w1"],          # [s_dim, hidden]
        "w2": params["w2"],          # [hidden, hidden]
        "b12": b12,                  # [2, hidden]
        "wh": wh,                    # [hidden, head_pad]
        "bh": bh,                    # [1, head_pad]
        "a_dim": a_dim,
        "head_pad": head_pad,
    }


def multi_gaussian_policy_forward(state, packed, *, block_b=512):
    """state: [B, s_dim] f32. packed: output of pack_params. Returns (mu, log_sigma)."""
    B, s_dim = state.shape
    a_dim = packed["a_dim"]
    head_pad = packed["head_pad"]
    hidden = packed["w1"].shape[1]

    # Batch tiling: one grid step for small batches, block_b-row tiles otherwise.
    if B <= block_b:
        bb = B
        Bp = B
    else:
        bb = block_b
        Bp = ((B + bb - 1) // bb) * bb
        if Bp != B:
            state = jnp.pad(state, ((0, Bp - B), (0, 0)))
    grid = (Bp // bb,)

    out = pl.pallas_call(
        functools.partial(_policy_fwd_kernel, a_dim=a_dim),
        out_shape=jax.ShapeDtypeStruct((Bp, head_pad), jnp.float32),
        grid_spec=pltpu.PrefetchScalarGridSpec(
            num_scalar_prefetch=0,
            grid=grid,
            in_specs=[
                pl.BlockSpec((bb, s_dim), lambda i: (i, 0)),        # state: batch-tiled
                pl.BlockSpec((s_dim, hidden), lambda i: (0, 0)),    # w1: VMEM-resident
                pl.BlockSpec((hidden, hidden), lambda i: (0, 0)),   # w2: VMEM-resident
                pl.BlockSpec((2, hidden), lambda i: (0, 0)),        # packed b1/b2
                pl.BlockSpec((hidden, head_pad), lambda i: (0, 0)), # fused head weight
                pl.BlockSpec((1, head_pad), lambda i: (0, 0)),      # fused head bias
            ],
            out_specs=pl.BlockSpec((bb, head_pad), lambda i: (i, 0)),
        ),
        compiler_params=pltpu.CompilerParams(
            dimension_semantics=("parallel",)),  # batch axis -> both TCs on v7x
    )(state, packed["w1"], packed["w2"], packed["b12"], packed["wh"], packed["bh"])

    mu = out[:B, :a_dim]
    log_sigma = out[:B, a_dim:2 * a_dim]
    return mu, log_sigma


def _xavier_uniform(key, fan_in, fan_out):
    # matches torch.nn.init.xavier_uniform_(gain=1); stored as [in, out]
    bound = math.sqrt(6.0 / (fan_in + fan_out))
    return jax.random.uniform(key, (fan_in, fan_out), jnp.float32, -bound, bound)


def init_params(key, s_dim, a_dim, hidden_dim):
    k1, k2, k3, k4 = jax.random.split(key, 4)
    return {
        "w1": _xavier_uniform(k1, s_dim, hidden_dim),
        "b1": jnp.zeros((1, hidden_dim), jnp.float32),
        "w2": _xavier_uniform(k2, hidden_dim, hidden_dim),
        "b2": jnp.zeros((1, hidden_dim), jnp.float32),
        "wmu": _xavier_uniform(k3, hidden_dim, a_dim),
        "bmu": jnp.zeros((1, a_dim), jnp.float32),
        "wls": _xavier_uniform(k4, hidden_dim, a_dim),
        "bls": jnp.zeros((1, a_dim), jnp.float32),
    }


def reference_forward(state, params):
    h1 = jnp.maximum(state @ params["w1"] + params["b1"], 0.0)
    h2 = jnp.maximum(h1 @ params["w2"] + params["b2"], 0.0)
    mu = h2 @ params["wmu"] + params["bmu"]
    ls = jnp.clip(h2 @ params["wls"] + params["bls"], LOG_SIG_MIN, LOG_SIG_MAX)
    return mu, ls


if __name__ == "__main__":
    # Small shapes consistent with the module: state [B, s_dim], hidden, a_dim.
    B, S_DIM, A_DIM, HIDDEN = 2, 8, 4, 32

    key = jax.random.PRNGKey(0)
    k_state, k_params, k_state2 = jax.random.split(key, 3)

    state = jax.random.normal(k_state, (B, S_DIM), jnp.float32)
    params = init_params(k_params, S_DIM, A_DIM, HIDDEN)
    packed = pack_params(params)

    # --- single-tile path (B=2) ---
    mu, log_sigma = multi_gaussian_policy_forward(state, packed)
    mu = jax.block_until_ready(mu)
    log_sigma = jax.block_until_ready(log_sigma)

    mu_ref, ls_ref = reference_forward(state, params)
    assert mu.shape == (B, A_DIM) and log_sigma.shape == (B, A_DIM)
    assert jnp.allclose(mu, mu_ref, atol=1e-5, rtol=1e-5)
    assert jnp.allclose(log_sigma, ls_ref, atol=1e-5, rtol=1e-5)
    assert bool(jnp.all(log_sigma <= LOG_SIG_MAX)) and bool(jnp.all(log_sigma >= LOG_SIG_MIN))

    # --- batch-tiled grid path (still small: B=16, block_b=8, grid=(2,)) ---
    B2 = 16
    state2 = jax.random.normal(k_state2, (B2, S_DIM), jnp.float32)
    mu2, ls2 = multi_gaussian_policy_forward(state2, packed, block_b=8)
    mu2 = jax.block_until_ready(mu2)
    ls2 = jax.block_until_ready(ls2)
    mu2_ref, ls2_ref = reference_forward(state2, params)
    assert jnp.allclose(mu2, mu2_ref, atol=1e-5, rtol=1e-5)
    assert jnp.allclose(ls2, ls2_ref, atol=1e-5, rtol=1e-5)

    # TODO(synk): sample() (rsample + tanh-squash log-prob) is stochastic and lives
    # outside forward(); it is intentionally not fused into this kernel.
    # TODO(synk): for v6e/v7x large-batch serving, store weights in bfloat16
    # (keep preferred_element_type=f32) and re-derive block_b against 64 MiB VMEM on v7x.

    print("KERNEL_OK")
</pallas_src>

<mosaic_0001>
module attributes {stable_mosaic.version = 11 : i64} {
  func.func @_policy_fwd_kernel(%arg0: i32, %arg1: memref<2x8xf32, #tpu.memory_space<vmem>>, %arg2: memref<8x32xf32, #tpu.memory_space<vmem>>, %arg3: memref<32x32xf32, #tpu.memory_space<vmem>>, %arg4: memref<2x32xf32, #tpu.memory_space<vmem>>, %arg5: memref<32x128xf32, #tpu.memory_space<vmem>>, %arg6: memref<1x128xf32, #tpu.memory_space<vmem>>, %arg7: memref<2x128xf32, #tpu.memory_space<vmem>>) attributes {dimension_semantics = [#tpu.dimension_semantics<parallel>], iteration_bounds = array<i64: 1>, scalar_prefetch = 0 : i64, scratch_operands = 0 : i64, tpu.core_type = #tpu.core_type<tc>, window_params = [{transform_indices = @transform_0, window_bounds = array<i64: 2, 8>}, {pipeline_mode = #tpu.pipeline_mode<synchronous>, transform_indices = @transform_1, window_bounds = array<i64: 8, 32>}, {pipeline_mode = #tpu.pipeline_mode<synchronous>, transform_indices = @transform_2, window_bounds = array<i64: 32, 32>}, {pipeline_mode = #tpu.pipeline_mode<synchronous>, transform_indices = @transform_3, window_bounds = array<i64: 2, 32>}, {pipeline_mode = #tpu.pipeline_mode<synchronous>, transform_indices = @transform_4, window_bounds = array<i64: 32, 128>}, {pipeline_mode = #tpu.pipeline_mode<synchronous>, transform_indices = @transform_5, window_bounds = array<i64: 1, 128>}, {transform_indices = @transform_6, window_bounds = array<i64: 2, 128>}]} {
    %c0 = arith.constant 0 : index
    %c0_0 = arith.constant 0 : index
    %0 = vector.load %arg1[%c0, %c0_0] : memref<2x8xf32, #tpu.memory_space<vmem>>, vector<2x8xf32>
    %c0_1 = arith.constant 0 : index
    %c0_2 = arith.constant 0 : index
    %1 = vector.load %arg2[%c0_1, %c0_2] : memref<8x32xf32, #tpu.memory_space<vmem>>, vector<8x32xf32>
    %cst = arith.constant dense<0.000000e+00> : vector<2x32xf32>
    %2 = tpu.matmul %0, %1, %cst {dimension_numbers = #tpu.dot_dimension_numbers<[1], [0], [0], [1], [0, 0, 1, 1], [], []>} : vector<2x8xf32>, vector<8x32xf32>, vector<2x32xf32> -> vector<2x32xf32>
    %c0_3 = arith.constant 0 : index
    %c0_4 = arith.constant 0 : index
    %3 = vector.load %arg4[%c0_3, %c0_4] : memref<2x32xf32, #tpu.memory_space<vmem>>, vector<1x32xf32>
    %4 = vector.broadcast %3 : vector<1x32xf32> to vector<2x32xf32>
    %5 = arith.addf %2, %4 : vector<2x32xf32>
    %cst_5 = arith.constant 0.000000e+00 : f32
    %6 = vector.broadcast %cst_5 : f32 to vector<2x32xf32>
    %7 = arith.maximumf %5, %6 : vector<2x32xf32>
    %c0_6 = arith.constant 0 : index
    %c0_7 = arith.constant 0 : index
    %8 = vector.load %arg3[%c0_6, %c0_7] : memref<32x32xf32, #tpu.memory_space<vmem>>, vector<32x32xf32>
    %cst_8 = arith.constant dense<0.000000e+00> : vector<2x32xf32>
    %9 = tpu.matmul %7, %8, %cst_8 {dimension_numbers = #tpu.dot_dimension_numbers<[1], [0], [0], [1], [0, 0, 1, 1], [], []>} : vector<2x32xf32>, vector<32x32xf32>, vector<2x32xf32> -> vector<2x32xf32>
    %c1 = arith.constant 1 : index
    %c0_9 = arith.constant 0 : index
    %10 = vector.load %arg4[%c1, %c0_9] : memref<2x32xf32, #tpu.memory_space<vmem>>, vector<1x32xf32>
    %11 = vector.broadcast %10 : vector<1x32xf32> to vector<2x32xf32>
    %12 = arith.addf %9, %11 : vector<2x32xf32>
    %cst_10 = arith.constant 0.000000e+00 : f32
    %13 = vector.broadcast %cst_10 : f32 to vector<2x32xf32>
    %14 = arith.maximumf %12, %13 : vector<2x32xf32>
    %c0_11 = arith.constant 0 : index
    %c0_12 = arith.constant 0 : index
    %15 = vector.load %arg5[%c0_11, %c0_12] : memref<32x128xf32, #tpu.memory_space<vmem>>, vector<32x128xf32>
    %cst_13 = arith.constant dense<0.000000e+00> : vector<2x128xf32>
    %16 = tpu.matmul %14, %15, %cst_13 {dimension_numbers = #tpu.dot_dimension_numbers<[1], [0], [0], [1], [0, 0, 1, 1], [], []>} : vector<2x32xf32>, vector<32x128xf32>, vector<2x128xf32> -> vector<2x128xf32>
    %c0_14 = arith.constant 0 : index
    %c0_15 = arith.constant 0 : index
    %17 = vector.load %arg6[%c0_14, %c0_15] : memref<1x128xf32, #tpu.memory_space<vmem>>, vector<1x128xf32>
    %18 = vector.broadcast %17 : vector<1x128xf32> to vector<2x128xf32>
    %19 = arith.addf %16, %18 : vector<2x128xf32>
    %20 = tpu.iota {dimensions = array<i32: 1>} : vector<2x128xi32>
    %c4_i32 = arith.constant 4 : i32
    %21 = vector.broadcast %c4_i32 : i32 to vector<2x128xi32>
    %22 = arith.cmpi slt, %20, %21 : vector<2x128xi32>
    %cst_16 = arith.constant -2.000000e+01 : f32
    %cst_17 = arith.constant 2.000000e+00 : f32
    %23 = vector.broadcast %cst_16 : f32 to vector<2x128xf32>
    %24 = arith.maximumf %23, %19 : vector<2x128xf32>
    %25 = vector.broadcast %cst_17 : f32 to vector<2x128xf32>
    %26 = arith.minimumf %25, %24 : vector<2x128xf32>
    %27 = arith.select %22, %19, %26 : vector<2x128xi1>, vector<2x128xf32>
    %c0_18 = arith.constant 0 : index
    %c0_19 = arith.constant 0 : index
    %28 = vector.load %arg7[%c0_18, %c0_19] : memref<2x128xf32, #tpu.memory_space<vmem>>, vector<2x128xf32>
    tpu.vector_store %arg7[%c0_18, %c0_19], %27 {strides = array<i32>} : memref<2x128xf32, #tpu.memory_space<vmem>>, vector<2x128xf32>,
    return
  }
  func.func @transform_0(%arg0: i32) -> (i32, i32) {
    %c0_i32 = arith.constant 0 : i32
    %c0_i32_0 = arith.constant 0 : i32
    return %arg0, %c0_i32 : i32, i32
  }
  func.func @transform_1(%arg0: i32) -> (i32, i32) {
    %c0_i32 = arith.constant 0 : i32
    %c0_i32_0 = arith.constant 0 : i32
    %c0_i32_1 = arith.constant 0 : i32
    return %c0_i32, %c0_i32_0 : i32, i32
  }
  func.func @transform_2(%arg0: i32) -> (i32, i32) {
    %c0_i32 = arith.constant 0 : i32
    %c0_i32_0 = arith.constant 0 : i32
    %c0_i32_1 = arith.constant 0 : i32
    return %c0_i32, %c0_i32_0 : i32, i32
  }
  func.func @transform_3(%arg0: i32) -> (i32, i32) {
    %c0_i32 = arith.constant 0 : i32
    %c0_i32_0 = arith.constant 0 : i32
    %c0_i32_1 = arith.constant 0 : i32
    return %c0_i32, %c0_i32_0 : i32, i32
  }
  func.func @transform_4(%arg0: i32) -> (i32, i32) {
    %c0_i32 = arith.constant 0 : i32
    %c0_i32_0 = arith.constant 0 : i32
    %c0_i32_1 = arith.constant 0 : i32
    return %c0_i32, %c0_i32_0 : i32, i32
  }
  func.func @transform_5(%arg0: i32) -> (i32, i32) {
    %c0_i32 = arith.constant 0 : i32
    %c0_i32_0 = arith.constant 0 : i32
    %c0_i32_1 = arith.constant 0 : i32
    return %c0_i32, %c0_i32_0 : i32, i32
  }
  func.func @transform_6(%arg0: i32) -> (i32, i32) {
    %c0_i32 = arith.constant 0 : i32
    %c0_i32_0 = arith.constant 0 : i32
    return %arg0, %c0_i32 : i32, i32
  }
}

</mosaic_0001>

<llo_original>
// kernel: tpu_custom_call.1
$region0: #{tpu_custom_call.1}
  #allocation0 [shape = 'u32[]', space=smem, size = 0x4, offset = 0x4, fixed_abs, tag = 'smem constant byte address 0x4 - core index']
  #allocation1 [shape = 'u32[144,128]{1,0:T(1,128)}', space=vmem, size = 0x12000, scoped, tag = 'internal scratch']
  %s0 = inlined_call_operand.hbm [shape: f32[2,8], index: 0, kind: input, shape index: {}]
  %s1 = inlined_call_operand.hbm [shape: f32[8,32], index: 1, kind: input, shape index: {}]
  %s2 = inlined_call_operand.hbm [shape: f32[32,32], index: 2, kind: input, shape index: {}]
  %s3 = inlined_call_operand.vmem [shape: f32[2,32], index: 3, kind: input, shape index: {}]
  %s4 = inlined_call_operand.hbm [shape: f32[32,128], index: 4, kind: input, shape index: {}]
  %s5 = inlined_call_operand.vmem [shape: f32[1,128], index: 5, kind: input, shape index: {}]
  %s6 = inlined_call_operand.hbm [shape: f32[2,128], index: 6, kind: output, shape index: {}]
  %s7 = sld [smem:[#allocation0]]
  $region50: #{tpu_custom_call.1} parent=0
    _
  %s9 = ssub.s32 1, %s7
  %s10 = scalar_select 0, %s9, %s7
  $region1: #{tpu_custom_call.1} parent=0
    #allocation2 [shape = 'u8[1024]{0}', space=vmem, size = 0x400, scoped, tag = 'input window, operand 0, single buffered']
    #allocation3 [shape = 's32[1]{0}', space=sflag, size = 0x4, scoped, tag = 'scoped memory for tpu_custom_call.1']
    #allocation4 [shape = 's32[1]{0}', space=sflag, size = 0x4, scoped, tag = 'scoped memory for tpu_custom_call.1']
    #allocation5 [shape = 'u8[4096]{0}', space=vmem, size = 0x1000, scoped, tag = 'input window, operand 1, single buffered']
    #allocation6 [shape = 's32[1]{0}', space=sflag, size = 0x4, scoped, tag = 'scoped memory for tpu_custom_call.1']
    #allocation7 [shape = 'u8[16384]{0}', space=vmem, size = 0x4000, scoped, tag = 'input window, operand 2, single buffered']
    #allocation8 [shape = 'u8[16384]{0}', space=vmem, size = 0x4000, scoped, tag = 'input window, operand 4, single buffered']
    #allocation9 [shape = 's32[1]{0}', space=sflag, size = 0x4, scoped, tag = 'scoped memory for tpu_custom_call.1']
    #allocation10 [shape = 'u8[1024]{0}', space=vmem, size = 0x400, scoped, tag = 'output window, operand 0, single buffered']
    %11 = vsyncpa [#allocation3], 0
    %12 = vsyncpa [#allocation6], 0
    %13 = vsyncpa [#allocation9], 0
    %14 = vsyncpa [#allocation4], 0
    // Predicated region
    $region2: #{tpu_custom_call.1} parent=1 // pred_check
      _
    $region3: #{tpu_custom_call.1} parent=1 // pred_check_branch
      %16 = sbr.rel (0) target = $region5
    $region4: #{tpu_custom_call.1} parent=1 // pred_region
      %s18 = ssub.s32 32, 32
      %19 = vsyncadd [#allocation3], %s18
      %s21 = sshll.u32 [#allocation2], 4
      %s22 = int_to_ptr.vmem [resolvable:$true] %s21
      %24 = dma.hbm_to_vmem [thread:$0]  %s0, 32, %s22, [#allocation3]
    $region5: #{tpu_custom_call.1} parent=1 // pred_fallthru
      _
    // Predicated region
    $region6: #{tpu_custom_call.1} parent=1 // pred_check
      _
    $region7: #{tpu_custom_call.1} parent=1 // pred_check_branch
      %26 = sbr.rel (0) target = $region9
    $region8: #{tpu_custom_call.1} parent=1 // pred_region
      %s28 = ssub.s32 128, 128
      %29 = vsyncadd [#allocation6], %s28
      %s31 = sshll.u32 [#allocation5], 4
      %s32 = int_to_ptr.vmem [resolvable:$true] %s31
      %34 = dma.hbm_to_vmem [thread:$0]  %s1, 128, %s32, [#allocation6]
    $region9: #{tpu_custom_call.1} parent=1 // pred_fallthru
      _
    // Predicated region
    $region10: #{tpu_custom_call.1} parent=1 // pred_check
      _
    $region11: #{tpu_custom_call.1} parent=1 // pred_check_branch
      %36 = sbr.rel (0) target = $region13
    $region12: #{tpu_custom_call.1} parent=1 // pred_region
      %s38 = ssub.s32 512, 512
      %39 = vsyncadd [#allocation6], %s38
      %s40 = sshll.u32 [#allocation7], 4
      %s41 = int_to_ptr.vmem [resolvable:$true] %s40
      %46 = dma.hbm_to_vmem [thread:$0]  %s2, 512, %s41, [#allocation6], 128, 128, 8
    $region13: #{tpu_custom_call.1} parent=1 // pred_fallthru
      _
    // Predicated region
    $region14: #{tpu_custom_call.1} parent=1 // pred_check
      _
    $region15: #{tpu_custom_call.1} parent=1 // pred_check_branch
      %48 = sbr.rel (0) target = $region17
    $region16: #{tpu_custom_call.1} parent=1 // pred_region
      _
    $region17: #{tpu_custom_call.1} parent=1 // pred_fallthru
      _
    // Predicated region
    $region18: #{tpu_custom_call.1} parent=1 // pred_check
      _
    $region19: #{tpu_custom_call.1} parent=1 // pred_check_branch
      %50 = sbr.rel (0) target = $region21
    $region20: #{tpu_custom_call.1} parent=1 // pred_region
      %s52 = ssub.s32 512, 512
      %53 = vsyncadd [#allocation9], %s52
      %s54 = sshll.u32 [#allocation8], 4
      %s55 = int_to_ptr.vmem [resolvable:$true] %s54
      %60 = dma.hbm_to_vmem [thread:$0]  %s4, 512, %s55, [#allocation9], 128, 128, 8
    $region21: #{tpu_custom_call.1} parent=1 // pred_fallthru
      _
    // Predicated region
    $region22: #{tpu_custom_call.1} parent=1 // pred_check
      _
    $region23: #{tpu_custom_call.1} parent=1 // pred_check_branch
      %62 = sbr.rel (0) target = $region25
    $region24: #{tpu_custom_call.1} parent=1 // pred_region
      _
    $region25: #{tpu_custom_call.1} parent=1 // pred_fallthru
      _
    // Predicated region
    $region26: #{tpu_custom_call.1} parent=1 // pred_check
      _
    $region27: #{tpu_custom_call.1} parent=1 // pred_check_branch
      %64 = sbr.rel (0) target = $region29
    $region28: #{tpu_custom_call.1} parent=1 // pred_region
      %65 = dma.done [#allocation3], 32
    $region29: #{tpu_custom_call.1} parent=1 // pred_fallthru
      _
    // Predicated region
    $region30: #{tpu_custom_call.1} parent=1 // pred_check
      _
    $region31: #{tpu_custom_call.1} parent=1 // pred_check_branch
      %67 = sbr.rel (0) target = $region33
    $region32: #{tpu_custom_call.1} parent=1 // pred_region
      %68 = dma.done [#allocation6], 128
    $region33: #{tpu_custom_call.1} parent=1 // pred_fallthru
      _
    // Predicated region
    $region34: #{tpu_custom_call.1} parent=1 // pred_check
      _
    $region35: #{tpu_custom_call.1} parent=1 // pred_check_branch
      %70 = sbr.rel (0) target = $region37
    $region36: #{tpu_custom_call.1} parent=1 // pred_region
      %71 = dma.done [#allocation6], 512
    $region37: #{tpu_custom_call.1} parent=1 // pred_fallthru
      _
    // Predicated region
    $region38: #{tpu_custom_call.1} parent=1 // pred_check
      _
    $region39: #{tpu_custom_call.1} parent=1 // pred_check_branch
      %73 = sbr.rel (0) target = $region41
    $region40: #{tpu_custom_call.1} parent=1 // pred_region
      %74 = dma.done [#allocation9], 512
    $region41: #{tpu_custom_call.1} parent=1 // pred_fallthru
      _
    %v75 = vld [vmem:[#allocation2] sm:$0x3]
    %v76 = vld [vmem:[#allocation5] sm:$0xff]
    %v77 = vld [vmem:[%s3] sm:$0x1]
    %v78 = vlaneseq
    %v79 = vshrl.u32 %v78, 7
    %v80 = vsub.s32 0, %v79
    %v81 = vrot.slane %v77, %v80
    %vm82 = vcmask 64512
    %v84 = vsel %vm82, %v75, 0
    %86 = vmatprep.subr.mxu0 0.0
    %87 = vmatpush1.msra.mxu0 %v76
    %88 = vmatprep.subr.mxu0 0.0
    %89 = vmatpush1.msra.mxu0 0.0
    %90 = vmatprep.subr.mxu0 0.0
    %91 = vmatpush1.msra.mxu0 0.0
    %92 = vmatprep.subr.mxu0 0.0
    %93 = vmatpush1.msra.mxu0 0.0
    %94 = vmatprep.subr.mxu0 0.0
    %95 = vmatpush1.msra.mxu0 0.0
    %96 = vmatprep.subr.mxu0 0.0
    %97 = vmatpush1.msra.mxu0 0.0
    %98 = vmatprep.subr.mxu0 0.0
    %99 = vmatpush1.msra.mxu0 0.0
    %100 = vmatprep.subr.mxu0 0.0
    %101 = vmatpush1.msra.mxu0 0.0
    %102 = vmatprep.subr.mxu0 0.0
    %103 = vmatpush1.msra.mxu0 0.0
    %104 = vmatprep.subr.mxu0 0.0
    %105 = vmatpush1.msra.mxu0 0.0
    %106 = vmatprep.subr.mxu0 0.0
    %107 = vmatpush1.msra.mxu0 0.0
    %108 = vmatprep.subr.mxu0 0.0
    %109 = vmatpush1.msra.mxu0 0.0
    %110 = vmatprep.subr.mxu0 0.0
    %111 = vmatpush1.msra.mxu0 0.0
    %112 = vmatprep.subr.mxu0 0.0
    %113 = vmatpush1.msra.mxu0 0.0
    %114 = vmatprep.subr.mxu0 0.0
    %115 = vmatpush1.msra.mxu0 0.0
    %116 = vmatprep.subr.mxu0 0.0
    %117 = vmatpush1.msra.mxu0 0.0
    %118 = vmatprep.subr.mxu0 0.0
    %119 = vmatpush1.msra.mxu0 0.0
    %120 = vmatprep.subr.mxu0 0.0
    %121 = vmatpush1.msra.mxu0 0.0
    %122 = vmatprep.subr.mxu0 0.0
    %123 = vmatpush1.msra.mxu0 0.0
    %124 = vmatprep.subr.mxu0 0.0
    %125 = vmatpush1.msra.mxu0 0.0
    %126 = vmatprep.subr.mxu0 0.0
    %127 = vmatpush1.msra.mxu0 0.0
    %128 = vmatprep.subr.mxu0 0.0
    %129 = vmatpush1.msra.mxu0 0.0
    %130 = vmatprep.subr.mxu0 0.0
    %131 = vmatpush1.msra.mxu0 0.0
    %132 = vmatprep.subr.mxu0 0.0
    %133 = vmatpush1.msra.mxu0 0.0
    %134 = vmatprep.subr.mxu0 0.0
    %135 = vmatpush1.msra.mxu0 0.0
    %136 = vmatprep.subr.mxu0 0.0
    %137 = vmatpush1.msra.mxu0 0.0
    %138 = vmatprep.subr.mxu0 0.0
    %139 = vmatpush1.msra.mxu0 0.0
    %140 = vmatprep.subr.mxu0 0.0
    %141 = vmatpush1.msra.mxu0 0.0
    %142 = vmatprep.subr.mxu0 0.0
    %143 = vmatpush1.msra.mxu0 0.0
    %144 = vmatprep.subr.mxu0 0.0
    %145 = vmatpush1.msra.mxu0 0.0
    %146 = vmatprep.subr.mxu0 0.0
    %147 = vmatpush1.msra.mxu0 0.0
    %148 = vmatprep.subr.mxu0 0.0
    %149 = vmatpush1.msra.mxu0 0.0
    %150 = vmatprep.mubr.f32.mxu0 0.0
    %151 = vmatmul.mubr.f32.gmra.mrb[0].mxu0 %v84
    %v152 = vpop.f32.mrb[0].mxu0
    %v153 = vadd.f32 %v81, %v152
    %v154 = vpop.f32.mrb[0].mxu0
    %155 = vdwg.mxu0
    %v156 = vmax.f32 %v153, 0.0
    %v157 = vld [vmem:[#allocation7] sm:$0xff]
    %v158 = vld [vmem:[#allocation7 + $0x8] sm:$0xff]
    %v159 = vld [vmem:[#allocation7 + $0x10] sm:$0xff]
    %v160 = vld [vmem:[#allocation7 + $0x18] sm:$0xff]
    %v161 = vld [vmem:[%s3 + $0x1] sm:$0x1]
    %v162 = vlaneseq
    %v163 = vshrl.u32 %v162, 7
    %v164 = vsub.s32 0, %v163
    %v165 = vrot.slane %v161, %v164
    %vm166 = vcmask 261120
    %v168 = vsel %vm166, %v156, 0
    %170 = vmatprep.subr.mxu0 0.0
    %171 = vmatpush1.msra.mxu0 %v157
    %172 = vmatprep.subr.mxu0 0.0
    %173 = vmatpush1.msra.mxu0 %v158
    %174 = vmatprep.subr.mxu0 0.0
    %175 = vmatpush1.msra.mxu0 %v159
    %176 = vmatprep.subr.mxu0 0.0
    %177 = vmatpush1.msra.mxu0 %v160
    %178 = vmatprep.subr.mxu0 0.0
    %179 = vmatpush1.msra.mxu0 0.0
    %180 = vmatprep.subr.mxu0 0.0
    %181 = vmatpush1.msra.mxu0 0.0
    %182 = vmatprep.subr.mxu0 0.0
    %183 = vmatpush1.msra.mxu0 0.0
    %184 = vmatprep.subr.mxu0 0.0
    %185 = vmatpush1.msra.mxu0 0.0
    %186 = vmatprep.subr.mxu0 0.0
    %187 = vmatpush1.msra.mxu0 0.0
    %188 = vmatprep.subr.mxu0 0.0
    %189 = vmatpush1.msra.mxu0 0.0
    %190 = vmatprep.subr.mxu0 0.0
    %191 = vmatpush1.msra.mxu0 0.0
    %192 = vmatprep.subr.mxu0 0.0
    %193 = vmatpush1.msra.mxu0 0.0
    %194 = vmatprep.subr.mxu0 0.0
    %195 = vmatpush1.msra.mxu0 0.0
    %196 = vmatprep.subr.mxu0 0.0
    %197 = vmatpush1.msra.mxu0 0.0
    %198 = vmatprep.subr.mxu0 0.0
    %199 = vmatpush1.msra.mxu0 0.0
    %200 = vmatprep.subr.mxu0 0.0
    %201 = vmatpush1.msra.mxu0 0.0
    %202 = vmatprep.subr.mxu0 0.0
    %203 = vmatpush1.msra.mxu0 0.0
    %204 = vmatprep.subr.mxu0 0.0
    %205 = vmatpush1.msra.mxu0 0.0
    %206 = vmatprep.subr.mxu0 0.0
    %207 = vmatpush1.msra.mxu0 0.0
    %208 = vmatprep.subr.mxu0 0.0
    %209 = vmatpush1.msra.mxu0 0.0
    %210 = vmatprep.subr.mxu0 0.0
    %211 = vmatpush1.msra.mxu0 0.0
    %212 = vmatprep.subr.mxu0 0.0
    %213 = vmatpush1.msra.mxu0 0.0
    %214 = vmatprep.subr.mxu0 0.0
    %215 = vmatpush1.msra.mxu0 0.0
    %216 = vmatprep.subr.mxu0 0.0
    %217 = vmatpush1.msra.mxu0 0.0
    %218 = vmatprep.subr.mxu0 0.0
    %219 = vmatpush1.msra.mxu0 0.0
    %220 = vmatprep.subr.mxu0 0.0
    %221 = vmatpush1.msra.mxu0 0.0
    %222 = vmatprep.subr.mxu0 0.0
    %223 = vmatpush1.msra.mxu0 0.0
    %224 = vmatprep.subr.mxu0 0.0
    %225 = vmatpush1.msra.mxu0 0.0
    %226 = vmatprep.subr.mxu0 0.0
    %227 = vmatpush1.msra.mxu0 0.0
    %228 = vmatprep.subr.mxu0 0.0
    %229 = vmatpush1.msra.mxu0 0.0
    %230 = vmatprep.subr.mxu0 0.0
    %231 = vmatpush1.msra.mxu0 0.0
    %232 = vmatprep.subr.mxu0 0.0
    %233 = vmatpush1.msra.mxu0 0.0
    %234 = vmatprep.mubr.f32.mxu0 0.0
    %235 = vmatmul.mubr.f32.gmra.mrb[0].mxu0 %v168
    %v236 = vpop.f32.mrb[0].mxu0
    %v237 = vadd.f32 %v165, %v236
    %v238 = vpop.f32.mrb[0].mxu0
    %239 = vdwg.mxu0
    %v240 = vmax.f32 %v237, 0.0
    %v241 = vld [vmem:[#allocation8] sm:$0xff]
    %v242 = vld [vmem:[#allocation8 + $0x8] sm:$0xff]
    %v243 = vld [vmem:[#allocation8 + $0x10] sm:$0xff]
    %v244 = vld [vmem:[#allocation8 + $0x18] sm:$0xff]
    %v245 = vld [vmem:[%s5] sm:$0x1]
    %v247 = vlaneseq
    %v248 = vshrl.u32 %v247, 7
    %v249 = vsub.s32 0, %v248
    %v250 = vrot.slane %v245, %v249
    %v253 = vsel %vm166, %v240, 0
    %255 = vmatprep.subr.mxu0 0.0
    %256 = vmatpush1.msra.mxu0 %v241
    %257 = vmatprep.subr.mxu0 0.0
    %258 = vmatpush1.msra.mxu0 %v242
    %259 = vmatprep.subr.mxu0 0.0
    %260 = vmatpush1.msra.mxu0 %v243
    %261 = vmatprep.subr.mxu0 0.0
    %262 = vmatpush1.msra.mxu0 %v244
    %263 = vmatprep.subr.mxu0 0.0
    %264 = vmatpush1.msra.mxu0 0.0
    %265 = vmatprep.subr.mxu0 0.0
    %266 = vmatpush1.msra.mxu0 0.0
    %267 = vmatprep.subr.mxu0 0.0
    %268 = vmatpush1.msra.mxu0 0.0
    %269 = vmatprep.subr.mxu0 0.0
    %270 = vmatpush1.msra.mxu0 0.0
    %271 = vmatprep.subr.mxu0 0.0
    %272 = vmatpush1.msra.mxu0 0.0
    %273 = vmatprep.subr.mxu0 0.0
    %274 = vmatpush1.msra.mxu0 0.0
    %275 = vmatprep.subr.mxu0 0.0
    %276 = vmatpush1.msra.mxu0 0.0
    %277 = vmatprep.subr.mxu0 0.0
    %278 = vmatpush1.msra.mxu0 0.0
    %279 = vmatprep.subr.mxu0 0.0
    %280 = vmatpush1.msra.mxu0 0.0
    %281 = vmatprep.subr.mxu0 0.0
    %282 = vmatpush1.msra.mxu0 0.0
    %283 = vmatprep.subr.mxu0 0.0
    %284 = vmatpush1.msra.mxu0 0.0
    %285 = vmatprep.subr.mxu0 0.0
    %286 = vmatpush1.msra.mxu0 0.0
    %287 = vmatprep.subr.mxu0 0.0
    %288 = vmatpush1.msra.mxu0 0.0
    %289 = vmatprep.subr.mxu0 0.0
    %290 = vmatpush1.msra.mxu0 0.0
    %291 = vmatprep.subr.mxu0 0.0
    %292 = vmatpush1.msra.mxu0 0.0
    %293 = vmatprep.subr.mxu0 0.0
    %294 = vmatpush1.msra.mxu0 0.0
    %295 = vmatprep.subr.mxu0 0.0
    %296 = vmatpush1.msra.mxu0 0.0
    %297 = vmatprep.subr.mxu0 0.0
    %298 = vmatpush1.msra.mxu0 0.0
    %299 = vmatprep.subr.mxu0 0.0
    %300 = vmatpush1.msra.mxu0 0.0
    %301 = vmatprep.subr.mxu0 0.0
    %302 = vmatpush1.msra.mxu0 0.0
    %303 = vmatprep.subr.mxu0 0.0
    %304 = vmatpush1.msra.mxu0 0.0
    %305 = vmatprep.subr.mxu0 0.0
    %306 = vmatpush1.msra.mxu0 0.0
    %307 = vmatprep.subr.mxu0 0.0
    %308 = vmatpush1.msra.mxu0 0.0
    %309 = vmatprep.subr.mxu0 0.0
    %310 = vmatpush1.msra.mxu0 0.0
    %311 = vmatprep.subr.mxu0 0.0
    %312 = vmatpush1.msra.mxu0 0.0
    %313 = vmatprep.subr.mxu0 0.0
    %314 = vmatpush1.msra.mxu0 0.0
    %315 = vmatprep.subr.mxu0 0.0
    %316 = vmatpush1.msra.mxu0 0.0
    %317 = vmatprep.subr.mxu0 0.0
    %318 = vmatpush1.msra.mxu0 0.0
    %319 = vmatprep.mubr.f32.mxu0 0.0
    %320 = vmatmul.mubr.f32.gmra.mrb[0].mxu0 %v253
    %v321 = vpop.f32.mrb[0].mxu0
    %v322 = vadd.f32 %v250, %v321
    %v323 = vpop.f32.mrb[0].mxu0
    %324 = vdwg.mxu0
    %v325 = vlaneseq
    %v326 = vand.u32 %v325, 127
    %vm327 = vcmp.lt.s32.totalorder %v326, 4
    %v328 = vmax.f32 %v322, -20.0
    %v329 = vmin.f32 %v328, 2.0
    %v330 = vsel %vm327, %v322, %v329
    %331 = vst [vmem:[#allocation10] sm:$0x3] %v330
    // Predicated region
    $region42: #{tpu_custom_call.1} parent=1 // pred_check
      _
    $region43: #{tpu_custom_call.1} parent=1 // pred_check_branch
      %333 = sbr.rel (0) target = $region45
    $region44: #{tpu_custom_call.1} parent=1 // pred_region
      %s335 = ssub.s32 32, 32
      %336 = vsyncadd [#allocation4], %s335
      %s338 = sshll.u32 [#allocation10], 4
      %s339 = int_to_ptr.vmem [resolvable:$true] %s338
      %341 = dma.vmem_to_hbm [thread:$0]  %s339, 32, %s6, [#allocation4]
    $region45: #{tpu_custom_call.1} parent=1 // pred_fallthru
      _
    // Predicated region
    $region46: #{tpu_custom_call.1} parent=1 // pred_check
      _
    $region47: #{tpu_custom_call.1} parent=1 // pred_check_branch
      %343 = sbr.rel (0) target = $region49
    $region48: #{tpu_custom_call.1} parent=1 // pred_region
      %344 = dma.done [#allocation4], 32
    $region49: #{tpu_custom_call.1} parent=1 // pred_fallthru
      _
    %345 = vsyncpa [#allocation3], 1
    %346 = vsyncpa [#allocation6], 1
    %347 = vsyncpa [#allocation9], 1
    %348 = vsyncpa [#allocation4], 1

</llo_original>
